<compile_context>
chip_gen: v5e
topology: v5e:2x2
jax: 0.10.0
libtpu: 0.0.40
codegen_flags: <defaults>
</compile_context>

<pallas_src>
import jax
import jax.numpy as jnp
from jax.experimental import pallas as pl
from jax.experimental.pallas import tpu as pltpu


# ---------------------------------------------------------------------------
# Plain-JAX glue reproducing the PyTorch helper semantics exactly.
# ---------------------------------------------------------------------------
def project_batch(R, eps):
    """torch project_batch: note I is a ZERO matrix (as in the reference)."""
    eps = eps / jnp.sqrt(jnp.asarray(R.shape[0], R.dtype))
    I = jnp.zeros((R.shape[1], R.shape[1]), dtype=R.dtype)[None, ...]
    diff = R - I
    norm_diff = jnp.sqrt(jnp.sum(diff * diff, axis=(1, 2), keepdims=True))
    mask = norm_diff <= eps
    # Safe denominator: avoids 0/0 -> NaN on the not-taken branch (and NaN
    # gradients through the where).
    safe_norm = jnp.maximum(norm_diff, jnp.asarray(jnp.finfo(R.dtype).tiny, R.dtype))
    return jnp.where(mask, R, I + eps * diff / safe_norm)


def cayley_batch(R):
    """Q = (I - skew) @ inv(I + skew), batched over the leading dim."""
    b, r, c = R.shape
    skew = 0.5 * (R - jnp.swapaxes(R, 1, 2))
    I = jnp.eye(r, dtype=R.dtype)[None, ...]
    # TODO(synk): small dense matrix inverse has no clean Pallas equivalent;
    # kept in plain JAX (it is one-time parameter preparation, not the hot path).
    return jnp.matmul(I - skew, jnp.linalg.inv(I + skew))


def rotate_weight_blockwise(W, Q, scaling):
    """filt_scaled = ((block_diag(Q) @ W^T)^T) * scaling, without ever
    materializing the dense (in, in) block-diagonal matrix.

    filt[o, j*blk + b] = sum_c W[o, j*blk + c] * Q[j, b, c]
    """
    out_features, in_features = W.shape
    r, blk, _ = Q.shape
    W_r = W.reshape(out_features, r, blk)
    filt = jnp.einsum("ojc,jbc->ojb", W_r, Q).reshape(out_features, in_features)
    return filt * scaling  # scaling is (out, 1): broadcasts over in_features


# ---------------------------------------------------------------------------
# Pallas kernel: streaming GEMM   out_tile = x_tile @ filt_scaled_tile^T
# ---------------------------------------------------------------------------
def oft_gemm_kernel(x_ref, w_ref, o_ref):
    # x_ref: (tm, in)   w_ref: (tn, in)   -> contract the shared `in` axis of
    # both operands with dot_general (no explicit .T -> no XLU traffic).
    o_ref[...] = jax.lax.dot_general(
        x_ref[...],
        w_ref[...],
        dimension_numbers=(((1,), (1,)), ((), ())),
        preferred_element_type=jnp.float32,
    ).astype(o_ref.dtype)


def _round_up(v, m):
    return ((v + m - 1) // m) * m


def oft_injected_linear_with_norm(x, R, W, scaling, *, r, eps, is_coft=True,
                                  block_share=False, tm=256, tn=None):
    """Forward pass of OFTInjectedLinear_with_norm (block_share=False path)."""
    assert not block_share, "only the default block_share=False path is implemented"
    out_features, in_features = W.shape
    blk = in_features // r
    eps_full = eps * blk * blk  # self.eps in __init__

    # --- parameter preparation (one-time, hoisted out of the kernel grid) ---
    if is_coft:
        R = project_batch(R, eps_full)
    Q = cayley_batch(R)                                   # (r, blk, blk)
    filt_scaled = rotate_weight_blockwise(W, Q, scaling)  # (out, in), f32
    filt_scaled = filt_scaled.astype(x.dtype)
    # NOTE: on v6e one could cast x / filt_scaled to bf16 here (keeping the
    # f32 accumulation inside the kernel) for ~2-4x MXU throughput; left in
    # full precision to match the reference bit-for-bit at 1e-4 tolerance.

    # --- streaming GEMM in Pallas, tiled over (N outer, M inner) ---
    lead_shape = x.shape[:-1]
    x2d = x.reshape(-1, in_features)
    M = x2d.shape[0]

    # Row tile: big (default 256) to fill the MXU, clamped for tiny inputs.
    tm_eff = min(tm, _round_up(max(M, 1), 8))
    # Output-feature tile: keep the full weight slab resident when moderate,
    # otherwise tile N (128-aligned) so the weight tile fits VMEM (v7x: 64 MiB).
    if tn is None:
        tn_eff = out_features if out_features <= 1024 else 512
    else:
        tn_eff = tn

    # Pad ragged M / N with zeros (cheap; <1 extra tile of work) and slice back.
    M_p = _round_up(M, tm_eff)
    if M_p != M:
        x2d = jnp.pad(x2d, ((0, M_p - M), (0, 0)))
    N_p = _round_up(out_features, tn_eff)
    w2d = filt_scaled
    if N_p != out_features:
        w2d = jnp.pad(w2d, ((0, N_p - out_features), (0, 0)))

    num_m = M_p // tm_eff
    num_n = N_p // tn_eff

    # Explicit VMEM budget: 2x-buffered x tile + weight tile + out tile.
    isz = x2d.dtype.itemsize
    vmem_need = (2 * tm_eff * in_features * isz
                 + 2 * tn_eff * in_features * w2d.dtype.itemsize
                 + 2 * tm_eff * tn_eff * isz)
    vmem_limit = int(min(max(vmem_need + (4 << 20), 32 << 20), 64 << 20))

    out2d = pl.pallas_call(
        oft_gemm_kernel,
        out_shape=jax.ShapeDtypeStruct((M_p, N_p), x.dtype),
        grid_spec=pltpu.PrefetchScalarGridSpec(
            num_scalar_prefetch=0,
            # N tiles outer so each weight tile is fetched once and stays
            # resident while all x row-tiles stream through the inner loop.
            grid=(num_n, num_m),
            in_specs=[
                pl.BlockSpec((tm_eff, in_features), lambda j, i: (i, 0)),
                pl.BlockSpec((tn_eff, in_features), lambda j, i: (j, 0)),
            ],
            out_specs=pl.BlockSpec((tm_eff, tn_eff), lambda j, i: (i, j)),
        ),
        compiler_params=pltpu.CompilerParams(
            dimension_semantics=("parallel", "parallel"),
            vmem_limit_bytes=vmem_limit,
        ),
    )(x2d, w2d)

    out2d = out2d[:M, :out_features]
    return out2d.reshape(*lead_shape, out_features)


# ---------------------------------------------------------------------------
# Pure-JAX reference (dense block-diagonal path, mirrors the torch code).
# ---------------------------------------------------------------------------
def reference_forward(x, R, W, scaling, *, r, eps, is_coft=True):
    in_features = W.shape[1]
    blk = in_features // r
    eps_full = eps * blk * blk
    if is_coft:
        R = project_batch(R, eps_full)
    Q = cayley_batch(R)
    bdiag = jax.scipy.linalg.block_diag(*[Q[i] for i in range(Q.shape[0])])
    filt = (bdiag @ W.T).T                   # (out, in)
    filt_scaled = filt * scaling             # (out, in)
    return jnp.einsum("...i,oi->...o", x, filt_scaled)


if __name__ == "__main__":
    # Module hyper-parameters (small, consistent with the module):
    in_features, out_features, r, eps = 32, 32, 4, 1e-5
    blk = in_features // r

    key = jax.random.PRNGKey(0)
    kx, kw, kr, ks, kx2 = jax.random.split(key, 5)

    # Synthetic deterministic parameters (shapes from __init__):
    #   OFT.weight: (out_features, in_features)
    #   R:          (r, in/r, in/r)   (__init__ uses zeros; random values
    #                                  exercise the full COFT/Cayley path)
    #   scaling_factors: (out_features, 1)
    bound = 1.0 / jnp.sqrt(jnp.float32(in_features))
    W = jax.random.uniform(kw, (out_features, in_features),
                           minval=-bound, maxval=bound, dtype=jnp.float32)
    R = 0.1 * jax.random.normal(kr, (r, blk, blk), dtype=jnp.float32)
    scaling = 1.0 + 0.05 * jax.random.normal(ks, (out_features, 1),
                                             dtype=jnp.float32)

    # Case 1: (batch=2, seq=8, in_features=32) — single tile.
    x = jax.random.normal(kx, (2, 8, in_features), dtype=jnp.float32)
    out = jax.block_until_ready(
        oft_injected_linear_with_norm(x, R, W, scaling, r=r, eps=eps))
    ref = reference_forward(x, R, W, scaling, r=r, eps=eps)
    assert out.shape == (2, 8, out_features)
    assert jnp.allclose(out, ref, atol=1e-4, rtol=1e-4), (
        float(jnp.max(jnp.abs(out - ref))))

    # Case 2: ragged row count (3 * 50 = 150 rows) with a smaller tm to
    # exercise the padded / multi-tile grid path.
    x2 = jax.random.normal(kx2, (3, 50, in_features), dtype=jnp.float32)
    out2 = jax.block_until_ready(
        oft_injected_linear_with_norm(x2, R, W, scaling, r=r, eps=eps, tm=64))
    ref2 = reference_forward(x2, R, W, scaling, r=r, eps=eps)
    assert out2.shape == (3, 50, out_features)
    assert jnp.allclose(out2, ref2, atol=1e-4, rtol=1e-4), (
        float(jnp.max(jnp.abs(out2 - ref2))))

    print("KERNEL_OK")
</pallas_src>

<mosaic_0001>
module attributes {stable_mosaic.version = 11 : i64} {
  func.func @oft_gemm_kernel(%arg0: i32, %arg1: i32, %arg2: memref<16x32xf32, #tpu.memory_space<vmem>>, %arg3: memref<32x32xf32, #tpu.memory_space<vmem>>, %arg4: memref<16x32xf32, #tpu.memory_space<vmem>>) attributes {dimension_semantics = [#tpu.dimension_semantics<parallel>, #tpu.dimension_semantics<parallel>], iteration_bounds = array<i64: 1, 1>, scalar_prefetch = 0 : i64, scratch_operands = 0 : i64, tpu.core_type = #tpu.core_type<tc>, window_params = [{transform_indices = @transform_0, window_bounds = array<i64: 16, 32>}, {transform_indices = @transform_1, window_bounds = array<i64: 32, 32>}, {transform_indices = @transform_2, window_bounds = array<i64: 16, 32>}]} {
    %c0 = arith.constant 0 : index
    %c0_0 = arith.constant 0 : index
    %0 = vector.load %arg2[%c0, %c0_0] : memref<16x32xf32, #tpu.memory_space<vmem>>, vector<16x32xf32>
    %c0_1 = arith.constant 0 : index
    %c0_2 = arith.constant 0 : index
    %1 = vector.load %arg3[%c0_1, %c0_2] : memref<32x32xf32, #tpu.memory_space<vmem>>, vector<32x32xf32>
    %cst = arith.constant dense<0.000000e+00> : vector<16x32xf32>
    %2 = tpu.matmul %0, %1, %cst {dimension_numbers = #tpu.dot_dimension_numbers<[1], [1], [0], [0], [0, 0, 1, 0], [], []>} : vector<16x32xf32>, vector<32x32xf32>, vector<16x32xf32> -> vector<16x32xf32>
    %c0_3 = arith.constant 0 : index
    %c0_4 = arith.constant 0 : index
    %3 = vector.load %arg4[%c0_3, %c0_4] : memref<16x32xf32, #tpu.memory_space<vmem>>, vector<16x32xf32>
    tpu.vector_store %arg4[%c0_3, %c0_4], %2 {strides = array<i32>} : memref<16x32xf32, #tpu.memory_space<vmem>>, vector<16x32xf32>,
    return
  }
  func.func @transform_0(%arg0: i32, %arg1: i32) -> (i32, i32) {
    %c0_i32 = arith.constant 0 : i32
    %c0_i32_0 = arith.constant 0 : i32
    return %arg1, %c0_i32 : i32, i32
  }
  func.func @transform_1(%arg0: i32, %arg1: i32) -> (i32, i32) {
    %c0_i32 = arith.constant 0 : i32
    %c0_i32_0 = arith.constant 0 : i32
    return %arg0, %c0_i32 : i32, i32
  }
  func.func @transform_2(%arg0: i32, %arg1: i32) -> (i32, i32) {
    %c0_i32 = arith.constant 0 : i32
    return %arg1, %arg0 : i32, i32
  }
}

</mosaic_0001>

<llo_original>
// kernel: tpu_custom_call.1
$region0: #{tpu_custom_call.1}
  #allocation0 [shape = 'u32[]', space=smem, size = 0x4, offset = 0x4, fixed_abs, tag = 'smem constant byte address 0x4 - core index']
  #allocation1 [shape = 'u32[72,128]{1,0:T(1,128)}', space=vmem, size = 0x9000, scoped, tag = 'internal scratch']
  %s0 = inlined_call_operand.hbm [shape: f32[16,32], index: 0, kind: input, shape index: {}]
  %s1 = inlined_call_operand.hbm [shape: f32[32,32], index: 1, kind: input, shape index: {}]
  %s2 = inlined_call_operand.hbm [shape: f32[16,32], index: 2, kind: output, shape index: {}]
  %s3 = sld [smem:[#allocation0]]
  $region26: #{tpu_custom_call.1} parent=0
    _
  %s5 = ssub.s32 1, %s3
  %s6 = scalar_select 0, %s5, %s3
  $region1: #{tpu_custom_call.1} parent=0
    #allocation2 [shape = 'u8[8192]{0}', space=vmem, size = 0x2000, scoped, tag = 'input window, operand 0, single buffered']
    #allocation3 [shape = 's32[1]{0}', space=sflag, size = 0x4, scoped, tag = 'scoped memory for tpu_custom_call.1']
    #allocation4 [shape = 's32[1]{0}', space=sflag, size = 0x4, scoped, tag = 'scoped memory for tpu_custom_call.1']
    #allocation5 [shape = 'u8[16384]{0}', space=vmem, size = 0x4000, scoped, tag = 'input window, operand 1, single buffered']
    #allocation6 [shape = 's32[1]{0}', space=sflag, size = 0x4, scoped, tag = 'scoped memory for tpu_custom_call.1']
    #allocation7 [shape = 'u8[8192]{0}', space=vmem, size = 0x2000, scoped, tag = 'output window, operand 0, single buffered']
    %7 = vsyncpa [#allocation3], 0
    %8 = vsyncpa [#allocation6], 0
    %9 = vsyncpa [#allocation4], 0
    // Predicated region
    $region2: #{tpu_custom_call.1} parent=1 // pred_check
      _
    $region3: #{tpu_custom_call.1} parent=1 // pred_check_branch
      %11 = sbr.rel (0) target = $region5
    $region4: #{tpu_custom_call.1} parent=1 // pred_region
      %13 = vsyncadd [#allocation3], 0
      %s14 = sshll.u32 %s0, 4
      %s15 = int_to_ptr.hbm [resolvable:$true] %s14
      %s16 = sshll.u32 [#allocation2], 4
      %s17 = int_to_ptr.vmem [resolvable:$true] %s16
      %22 = dma.hbm_to_vmem [thread:$0]  %s15, 256, %s17, [#allocation3], 128, 128, 8
    $region5: #{tpu_custom_call.1} parent=1 // pred_fallthru
      _
    // Predicated region
    $region6: #{tpu_custom_call.1} parent=1 // pred_check
      _
    $region7: #{tpu_custom_call.1} parent=1 // pred_check_branch
      %24 = sbr.rel (0) target = $region9
    $region8: #{tpu_custom_call.1} parent=1 // pred_region
      %26 = vsyncadd [#allocation6], 0
      %s27 = sshll.u32 %s1, 4
      %s28 = int_to_ptr.hbm [resolvable:$true] %s27
      %s29 = sshll.u32 [#allocation5], 4
      %s30 = int_to_ptr.vmem [resolvable:$true] %s29
      %35 = dma.hbm_to_vmem [thread:$0]  %s28, 512, %s30, [#allocation6], 128, 128, 8
    $region9: #{tpu_custom_call.1} parent=1 // pred_fallthru
      _
    // Predicated region
    $region10: #{tpu_custom_call.1} parent=1 // pred_check
      _
    $region11: #{tpu_custom_call.1} parent=1 // pred_check_branch
      %37 = sbr.rel (0) target = $region13
    $region12: #{tpu_custom_call.1} parent=1 // pred_region
      %39 = dma.done [#allocation3], 256
    $region13: #{tpu_custom_call.1} parent=1 // pred_fallthru
      _
    // Predicated region
    $region14: #{tpu_custom_call.1} parent=1 // pred_check
      _
    $region15: #{tpu_custom_call.1} parent=1 // pred_check_branch
      %41 = sbr.rel (0) target = $region17
    $region16: #{tpu_custom_call.1} parent=1 // pred_region
      %43 = dma.done [#allocation6], 512
    $region17: #{tpu_custom_call.1} parent=1 // pred_fallthru
      _
    %v44 = vld [vmem:[#allocation2] sm:$0xff]
    %v45 = vld [vmem:[#allocation2 + $0x8] sm:$0xff]
    %v46 = vld [vmem:[#allocation5] sm:$0xff]
    %v47 = vld [vmem:[#allocation5 + $0x8] sm:$0xff]
    %v48 = vld [vmem:[#allocation5 + $0x10] sm:$0xff]
    %v49 = vld [vmem:[#allocation5 + $0x18] sm:$0xff]
    %vm50 = vcmask 261120
    %v52 = vsel %vm50, %v44, 0
    %v55 = vsel %vm50, %v45, 0
    %v58 = vsel %vm50, %v46, 0
    %v61 = vsel %vm50, %v47, 0
    %v64 = vsel %vm50, %v48, 0
    %v67 = vsel %vm50, %v49, 0
    %69 = vmatpush.xpose.msra.mxu0 0.0
    %70 = vmatpush.xpose.msra.mxu0 0.0
    %71 = vmatpush.xpose.msra.mxu0 0.0
    %72 = vmatpush.xpose.msra.mxu0 0.0
    %73 = vmatpush.xpose.msra.mxu0 0.0
    %74 = vmatpush.xpose.msra.mxu0 0.0
    %75 = vmatpush.xpose.msra.mxu0 0.0
    %76 = vmatpush.xpose.msra.mxu0 0.0
    %77 = vmatpush.xpose.msra.mxu0 0.0
    %78 = vmatpush.xpose.msra.mxu0 0.0
    %79 = vmatpush.xpose.msra.mxu0 0.0
    %80 = vmatpush.xpose.msra.mxu0 0.0
    %81 = vmatpush.xpose.msra.mxu0 %v67
    %82 = vmatpush.xpose.msra.mxu0 %v64
    %83 = vmatpush.xpose.msra.mxu0 %v61
    %84 = vmatpush.xpose.msra.mxu0 %v58
    %85 = vmatmul.f32.gmra.mxu0 %v52
    %v86 = vpop.f32.mrf.mxu0
    %v87 = vadd.f32 0.0, %v86
    %88 = vmatmul.f32.gmra.mxu0 %v55
    %v89 = vpop.f32.mrf.mxu0
    %v90 = vadd.f32 0.0, %v89
    %91 = vdwg.mxu0
    %92 = vst.msk [vmem:[#allocation7] sm:$0xff] %vm50, %v87
    %93 = vst.msk [vmem:[#allocation7 + $0x8] sm:$0xff] %vm50, %v90
    // Predicated region
    $region18: #{tpu_custom_call.1} parent=1 // pred_check
      _
    $region19: #{tpu_custom_call.1} parent=1 // pred_check_branch
      %95 = sbr.rel (0) target = $region21
    $region20: #{tpu_custom_call.1} parent=1 // pred_region
      %97 = vsyncadd [#allocation4], 0
      %s98 = sshll.u32 [#allocation7], 4
      %s99 = int_to_ptr.vmem [resolvable:$true] %s98
      %s100 = sshll.u32 %s2, 4
      %s101 = int_to_ptr.hbm [resolvable:$true] %s100
      %106 = dma.vmem_to_hbm [thread:$0]  %s99, 256, %s101, [#allocation4], 128, 128, 8
    $region21: #{tpu_custom_call.1} parent=1 // pred_fallthru
      _
    // Predicated region
    $region22: #{tpu_custom_call.1} parent=1 // pred_check
      _
    $region23: #{tpu_custom_call.1} parent=1 // pred_check_branch
      %108 = sbr.rel (0) target = $region25
    $region24: #{tpu_custom_call.1} parent=1 // pred_region
      %110 = dma.done [#allocation4], 256
    $region25: #{tpu_custom_call.1} parent=1 // pred_fallthru
      _
    %111 = vsyncpa [#allocation3], 1
    %112 = vsyncpa [#allocation6], 1
    %113 = vsyncpa [#allocation4], 1

</llo_original>
